<compile_context>
chip_gen: v7x
topology: tpu7x:2x2x1
jax: 0.10.0
libtpu: 0.0.40
codegen_flags: <defaults>
</compile_context>

<pallas_src>
import jax
import jax.numpy as jnp
from jax.experimental import pallas as pl
from jax.experimental.pallas import tpu as pltpu

LANE = 128             # TPU lane width (last-dim tiling unit)
NODE_TILE = 256        # row / contraction tile for the tiled path
FUSED_MAX_NODES = 256  # n_pad at or below this -> single fused kernel


# ----------------------------- Pallas kernels --------------------------------
def gcn_fused_kernel(a_ref, x_ref, wt_ref, b_ref, o_ref):
    # x_lin = X @ W^T on the MXU (bf16 x bf16 -> f32 accumulate).
    x_lin = jnp.dot(x_ref[...], wt_ref[...], preferred_element_type=jnp.float32)
    # out = A_hat @ x_lin + bias (bias broadcast over nodes).
    agg = jnp.dot(a_ref[...], x_lin.astype(jnp.bfloat16),
                  preferred_element_type=jnp.float32)
    o_ref[...] = agg + b_ref[...]


def gcn_tiled_kernel(a_ref, x_ref, wt_ref, b_ref, o_ref, acc_ref):
    # Grid: (row tiles i [parallel], contraction tiles k [arbitrary]).
    k = pl.program_id(1)

    @pl.when(k == 0)
    def _():
        acc_ref[...] = jnp.zeros_like(acc_ref)

    x_lin = jnp.dot(x_ref[...], wt_ref[...], preferred_element_type=jnp.float32)
    acc_ref[...] += jnp.dot(a_ref[...], x_lin.astype(jnp.bfloat16),
                            preferred_element_type=jnp.float32)

    @pl.when(k == pl.num_programs(1) - 1)
    def _():
        o_ref[...] = acc_ref[...] + b_ref[...]


# ------------------------------ plain-JAX glue --------------------------------
def _round_up(v, m):
    return ((v + m - 1) // m) * m


def build_gcn_norm_adjacency(edge_index, num_nodes, num_nodes_padded):
    """Dense normalized adjacency A_hat[dst, src] = d^-1/2[dst] * d^-1/2[src] with
    self-loops (PyG gcn_norm, edge_weight=1), built directly at the padded size.
    Padded rows/cols are zero.  Duplicate edges accumulate, matching PyG."""
    src = edge_index[0]
    dst = edge_index[1]
    loop = jnp.arange(num_nodes, dtype=src.dtype)
    src_full = jnp.concatenate([src, loop])
    dst_full = jnp.concatenate([dst, loop])
    w = jnp.ones_like(src_full, dtype=jnp.float32)
    deg = jnp.zeros((num_nodes,), jnp.float32).at[dst_full].add(w)
    deg_inv_sqrt = jnp.where(deg > 0, deg ** -0.5, 0.0)
    norm = deg_inv_sqrt[src_full] * w * deg_inv_sqrt[dst_full]
    a_hat = jnp.zeros((num_nodes_padded, num_nodes_padded), jnp.float32)
    a_hat = a_hat.at[dst_full, src_full].add(norm)
    return a_hat


def gcn_forward(x, edge_index, w, b):
    """x: [N, F] f32, edge_index: [2, E] int, w: [H, F] f32, b: [H] f32 -> [N, H] f32."""
    n, f = x.shape
    h = w.shape[0]
    f_pad = _round_up(f, LANE)
    h_pad = _round_up(h, LANE)

    use_fused = _round_up(n, LANE) <= FUSED_MAX_NODES
    n_pad = _round_up(n, LANE) if use_fused else _round_up(n, NODE_TILE)

    # Lane/sublane-dense, bf16 MXU operands (f32 accumulation inside the kernel).
    a_bf = build_gcn_norm_adjacency(edge_index, n, n_pad).astype(jnp.bfloat16)
    x_bf = jnp.pad(x.astype(jnp.float32),
                   ((0, n_pad - n), (0, f_pad - f))).astype(jnp.bfloat16)
    wt_bf = jnp.pad(w.T.astype(jnp.float32),
                    ((0, f_pad - f), (0, h_pad - h))).astype(jnp.bfloat16)
    b2d = jnp.pad(b.astype(jnp.float32).reshape(1, h), ((0, 0), (0, h_pad - h)))

    bytes_accessed = int(a_bf.size * 2 + x_bf.size * 2 + wt_bf.size * 2
                         + b2d.size * 4 + n_pad * h_pad * 4)

    if use_fused:
        flops = 2 * (n_pad * f_pad * h_pad + n_pad * n_pad * h_pad)
        out_pad = pl.pallas_call(
            gcn_fused_kernel,
            out_shape=jax.ShapeDtypeStruct((n_pad, h_pad), jnp.float32),
            in_specs=[
                pl.BlockSpec(memory_space=pltpu.MemorySpace.VMEM),  # A_hat
                pl.BlockSpec(memory_space=pltpu.MemorySpace.VMEM),  # x
                pl.BlockSpec(memory_space=pltpu.MemorySpace.VMEM),  # W^T
                pl.BlockSpec(memory_space=pltpu.MemorySpace.VMEM),  # bias
            ],
            out_specs=pl.BlockSpec(memory_space=pltpu.MemorySpace.VMEM),
            compiler_params=pltpu.CompilerParams(vmem_limit_bytes=64 * 1024 * 1024),
            cost_estimate=pl.CostEstimate(flops=flops, transcendentals=0,
                                          bytes_accessed=bytes_accessed),
        )(a_bf, x_bf, wt_bf, b2d)
    else:
        gm = n_pad // NODE_TILE
        gk = n_pad // NODE_TILE
        # x_lin (tile_k x H) is recomputed per row tile -> F-term appears gm times.
        flops = 2 * (gm * n_pad * f_pad * h_pad + n_pad * n_pad * h_pad)
        out_pad = pl.pallas_call(
            gcn_tiled_kernel,
            out_shape=jax.ShapeDtypeStruct((n_pad, h_pad), jnp.float32),
            grid_spec=pltpu.PrefetchScalarGridSpec(
                num_scalar_prefetch=0,
                grid=(gm, gk),
                in_specs=[
                    pl.BlockSpec((NODE_TILE, NODE_TILE), lambda i, k: (i, k)),  # A_hat
                    pl.BlockSpec((NODE_TILE, f_pad), lambda i, k: (k, 0)),      # x rows
                    pl.BlockSpec((f_pad, h_pad), lambda i, k: (0, 0)),          # W^T
                    pl.BlockSpec((1, h_pad), lambda i, k: (0, 0)),              # bias
                ],
                out_specs=pl.BlockSpec((NODE_TILE, h_pad), lambda i, k: (i, 0)),
                scratch_shapes=[pltpu.VMEM((NODE_TILE, h_pad), jnp.float32)],
            ),
            compiler_params=pltpu.CompilerParams(
                dimension_semantics=("parallel", "arbitrary"),
                vmem_limit_bytes=64 * 1024 * 1024,
            ),
            cost_estimate=pl.CostEstimate(flops=flops, transcendentals=0,
                                          bytes_accessed=bytes_accessed),
        )(a_bf, x_bf, wt_bf, b2d)

    return out_pad[:n, :h]


# jit so the adjacency build / padding fuse and overlap with the custom call.
_gcn_forward_jit = jax.jit(gcn_forward)


class SentenceGNNPallas:
    def __init__(self, n_hidden, n_features, key):
        kw, kb = jax.random.split(key)
        # Deterministic synthetic init (Glorot-ish for W, small uniform bias).
        scale = (6.0 / (n_features + n_hidden)) ** 0.5
        self.w = jax.random.uniform(kw, (n_hidden, n_features),
                                    minval=-scale, maxval=scale, dtype=jnp.float32)
        self.b = jax.random.uniform(kb, (n_hidden,),
                                    minval=-0.1, maxval=0.1, dtype=jnp.float32)

    def __call__(self, x, edge_index):
        return _gcn_forward_jit(x, edge_index, self.w, self.b)


# Pure-JAX f32 reference for correctness checking.
def gcn_reference(x, edge_index, w, b):
    n = x.shape[0]
    a_hat = build_gcn_norm_adjacency(edge_index, n, n)
    return a_hat @ (x @ w.T) + b[None, :]


if __name__ == "__main__":
    key = jax.random.PRNGKey(0)
    k_x, k_param, k_x2 = jax.random.split(key, 3)

    n_features = 4
    n_hidden = 6

    # edge_index from the module: [[0,1],[1,4],[4,3],[3,2]].t() -> [2, 4]
    edge_index = jnp.array([[0, 1, 4, 3],
                            [1, 4, 3, 2]], dtype=jnp.int32)
    num_nodes = 5  # nodes 0..4

    x = jax.random.normal(k_x, (num_nodes, n_features), dtype=jnp.float32)
    model = SentenceGNNPallas(n_hidden, n_features, k_param)

    # --- small graph: fused whole-in-VMEM path ---
    out = jax.block_until_ready(model(x, edge_index))
    ref = gcn_reference(x, edge_index, model.w, model.b)
    assert out.shape == (num_nodes, n_hidden)
    # bf16 MXU inputs with f32 accumulation -> compare with bf16-level tolerance.
    assert jnp.allclose(out, ref, atol=5e-2, rtol=5e-2), \
        float(jnp.max(jnp.abs(out - ref)))

    # --- larger synthetic chain graph: exercises the tiled (gridded) path ---
    n_big = 300
    edge_big = jnp.stack([jnp.arange(n_big - 1, dtype=jnp.int32),
                          jnp.arange(1, n_big, dtype=jnp.int32)])
    x_big = jax.random.normal(k_x2, (n_big, n_features), dtype=jnp.float32)
    out_big = jax.block_until_ready(model(x_big, edge_big))
    ref_big = gcn_reference(x_big, edge_big, model.w, model.b)
    assert out_big.shape == (n_big, n_hidden)
    assert jnp.allclose(out_big, ref_big, atol=5e-2, rtol=5e-2), \
        float(jnp.max(jnp.abs(out_big - ref_big)))

    print("KERNEL_OK")
</pallas_src>

<mosaic_0001>
module attributes {stable_mosaic.version = 11 : i64} {
  func.func @gcn_fused_kernel(%arg0: memref<128x128xbf16, #tpu.memory_space<vmem>>, %arg1: memref<128x128xbf16, #tpu.memory_space<vmem>>, %arg2: memref<128x128xbf16, #tpu.memory_space<vmem>>, %arg3: memref<1x128xf32, #tpu.memory_space<vmem>>, %arg4: memref<128x128xf32, #tpu.memory_space<vmem>>) attributes {dimension_semantics = [], scalar_prefetch = 0 : i64, scratch_operands = 0 : i64, tpu.core_type = #tpu.core_type<tc>} {
    %c0 = arith.constant 0 : index
    %c0_0 = arith.constant 0 : index
    %0 = vector.load %arg1[%c0, %c0_0] : memref<128x128xbf16, #tpu.memory_space<vmem>>, vector<128x128xbf16>
    %c0_1 = arith.constant 0 : index
    %c0_2 = arith.constant 0 : index
    %1 = vector.load %arg2[%c0_1, %c0_2] : memref<128x128xbf16, #tpu.memory_space<vmem>>, vector<128x128xbf16>
    %cst = arith.constant dense<0.000000e+00> : vector<128x128xf32>
    %2 = tpu.matmul %0, %1, %cst {dimension_numbers = #tpu.dot_dimension_numbers<[1], [0], [0], [1], [0, 0, 1, 1], [], []>} : vector<128x128xbf16>, vector<128x128xbf16>, vector<128x128xf32> -> vector<128x128xf32>
    %c0_3 = arith.constant 0 : index
    %c0_4 = arith.constant 0 : index
    %3 = vector.load %arg0[%c0_3, %c0_4] : memref<128x128xbf16, #tpu.memory_space<vmem>>, vector<128x128xbf16>
    %4 = arith.truncf %2 : vector<128x128xf32> to vector<128x128xbf16>
    %cst_5 = arith.constant dense<0.000000e+00> : vector<128x128xf32>
    %5 = tpu.matmul %3, %4, %cst_5 {dimension_numbers = #tpu.dot_dimension_numbers<[1], [0], [0], [1], [0, 0, 1, 1], [], []>} : vector<128x128xbf16>, vector<128x128xbf16>, vector<128x128xf32> -> vector<128x128xf32>
    %c0_6 = arith.constant 0 : index
    %c0_7 = arith.constant 0 : index
    %6 = vector.load %arg3[%c0_6, %c0_7] : memref<1x128xf32, #tpu.memory_space<vmem>>, vector<1x128xf32>
    %7 = vector.broadcast %6 : vector<1x128xf32> to vector<128x128xf32>
    %8 = arith.addf %5, %7 : vector<128x128xf32>
    %c0_8 = arith.constant 0 : index
    %c0_9 = arith.constant 0 : index
    %9 = vector.load %arg4[%c0_8, %c0_9] : memref<128x128xf32, #tpu.memory_space<vmem>>, vector<128x128xf32>
    tpu.vector_store %arg4[%c0_8, %c0_9], %8 {strides = array<i32>} : memref<128x128xf32, #tpu.memory_space<vmem>>, vector<128x128xf32>,
    return
  }
}

</mosaic_0001>

<llo_original>
// kernel: mul.1
$region0: #{mul.1}
  #allocation0 [shape = 's32[1]{0}', space=sflag, size = 0x4, scoped, tag = 'scoped memory for mul.1']
  %s0 = inlined_call_operand.vmem [shape: f32[9], index: 0, kind: input, shape index: {}]
  %s1 = inlined_call_operand.vmem [shape: f32[9], index: 1, kind: input, shape index: {}]
  %s2 = inlined_call_operand.vmem [shape: f32[9], index: 2, kind: output, shape index: {}]
  %v3 = vld [vmem:[%s0] sm:$0x1]
  %v4 = vld [vmem:[%s1] sm:$0x1]
  %5 = xla_tuple %v3, %v4
  %6 = xla_tuple %5
  %v7 = vmul.f32 %v3, %v4
  %8 = xla_tuple %v7
  %9 = vst [vmem:[%s2] sm:$0x1] %v7

// kernel: gcn_forward.1
$region0: #{gcn_forward.1}
  #allocation0 [shape = 'u32[]', space=smem, size = 0x4, offset = 0x4, fixed_abs, tag = 'smem constant byte address 0x4 - core index']
  #allocation1 [shape = 'u32[144,128]{1,0:T(1,128)}', space=vmem, size = 0x12000, scoped, tag = 'internal scratch']
  %s0 = inlined_call_operand.hbm [shape: bf16[128,128], index: 0, kind: input, shape index: {}]
  %s1 = inlined_call_operand.hbm [shape: bf16[128,128], index: 1, kind: input, shape index: {}]
  %s2 = inlined_call_operand.hbm [shape: bf16[128,128], index: 2, kind: input, shape index: {}]
  %s3 = inlined_call_operand.hbm [shape: f32[1,128], index: 3, kind: input, shape index: {}]
  %s4 = inlined_call_operand.hbm [shape: f32[128,128], index: 4, kind: output, shape index: {}]
  %s5 = sld [smem:[#allocation0]]
  $region42: #{gcn_forward.1} parent=0
    _
  %s7 = ssub.s32 1, %s5
  %s8 = scalar_select 0, %s7, %s5
  $region1: #{gcn_forward.1} parent=0
    #allocation2 [shape = 'u8[32768]{0}', space=vmem, size = 0x8000, scoped, tag = 'input window, operand 0, single buffered']
    #allocation3 [shape = 's32[1]{0}', space=sflag, size = 0x4, scoped, tag = 'scoped memory for gcn_forward.1']
    #allocation4 [shape = 's32[1]{0}', space=sflag, size = 0x4, scoped, tag = 'scoped memory for gcn_forward.1']
    #allocation5 [shape = 'u8[32768]{0}', space=vmem, size = 0x8000, scoped, tag = 'input window, operand 1, single buffered']
    #allocation6 [shape = 's32[1]{0}', space=sflag, size = 0x4, scoped, tag = 'scoped memory for gcn_forward.1']
    #allocation7 [shape = 'u8[32768]{0}', space=vmem, size = 0x8000, scoped, tag = 'input window, operand 2, single buffered']
    #allocation8 [shape = 'u8[512]{0}', space=vmem, size = 0x400, scoped, tag = 'input window, operand 3, single buffered']
    #allocation9 [shape = 's32[1]{0}', space=sflag, size = 0x4, scoped, tag = 'scoped memory for gcn_forward.1']
    #allocation10 [shape = 'u8[65536]{0}', space=vmem, size = 0x10000, scoped, tag = 'output window, operand 0, single buffered']
    %9 = vsyncpa [#allocation3], 0
    %10 = vsyncpa [#allocation6], 0
    %11 = vsyncpa [#allocation9], 0
    %12 = vsyncpa [#allocation4], 0
    // Predicated region
    $region2: #{gcn_forward.1} parent=1 // pred_check
      _
    $region3: #{gcn_forward.1} parent=1 // pred_check_branch
      %14 = sbr.rel (0) target = $region5
    $region4: #{gcn_forward.1} parent=1 // pred_region
      %s16 = ssub.s32 1024, 1024
      %17 = vsyncadd [#allocation3], %s16
      %s18 = sshll.u32 [#allocation2], 4
      %s19 = int_to_ptr.vmem [resolvable:$true] %s18
      %24 = dma.hbm_to_vmem [thread:$0]  %s0, 1024, %s19, [#allocation3], 64, 64, 4
    $region5: #{gcn_forward.1} parent=1 // pred_fallthru
      _
    // Predicated region
    $region6: #{gcn_forward.1} parent=1 // pred_check
      _
    $region7: #{gcn_forward.1} parent=1 // pred_check_branch
      %26 = sbr.rel (0) target = $region9
    $region8: #{gcn_forward.1} parent=1 // pred_region
      %s28 = ssub.s32 1024, 1024
      %29 = vsyncadd [#allocation6], %s28
      %s30 = sshll.u32 [#allocation5], 4
      %s31 = int_to_ptr.vmem [resolvable:$true] %s30
      %36 = dma.hbm_to_vmem [thread:$0]  %s1, 1024, %s31, [#allocation6], 64, 64, 4
    $region9: #{gcn_forward.1} parent=1 // pred_fallthru
      _
    // Predicated region
    $region10: #{gcn_forward.1} parent=1 // pred_check
      _
    $region11: #{gcn_forward.1} parent=1 // pred_check_branch
      %38 = sbr.rel (0) target = $region13
    $region12: #{gcn_forward.1} parent=1 // pred_region
      %s40 = ssub.s32 1024, 1024
      %41 = vsyncadd [#allocation6], %s40
      %s42 = sshll.u32 [#allocation7], 4
      %s43 = int_to_ptr.vmem [resolvable:$true] %s42
      %48 = dma.hbm_to_vmem [thread:$0]  %s2, 1024, %s43, [#allocation6], 64, 64, 4
    $region13: #{gcn_forward.1} parent=1 // pred_fallthru
      _
    // Predicated region
    $region14: #{gcn_forward.1} parent=1 // pred_check
      _
    $region15: #{gcn_forward.1} parent=1 // pred_check_branch
      %50 = sbr.rel (0) target = $region17
    $region16: #{gcn_forward.1} parent=1 // pred_region
      %s52 = ssub.s32 16, 16
      %53 = vsyncadd [#allocation9], %s52
      %s55 = sshll.u32 [#allocation8], 4
      %s56 = int_to_ptr.vmem [resolvable:$true] %s55
      %58 = dma.hbm_to_vmem [thread:$0]  %s3, 16, %s56, [#allocation9]
    $region17: #{gcn_forward.1} parent=1 // pred_fallthru
      _
    // Predicated region
    $region18: #{gcn_forward.1} parent=1 // pred_check
      _
    $region19: #{gcn_forward.1} parent=1 // pred_check_branch
      %60 = sbr.rel (0) target = $region21
    $region20: #{gcn_forward.1} parent=1 // pred_region
      %61 = dma.done [#allocation3], 1024
    $region21: #{gcn_forward.1} parent=1 // pred_fallthru
      _
    // Predicated region
    $region22: #{gcn_forward.1} parent=1 // pred_check
      _
    $region23: #{gcn_forward.1} parent=1 // pred_check_branch
      %63 = sbr.rel (0) target = $region25
    $region24: #{gcn_forward.1} parent=1 // pred_region
      %64 = dma.done [#allocation6], 1024
    $region25: #{gcn_forward.1} parent=1 // pred_fallthru
      _
    // Predicated region
    $region26: #{gcn_forward.1} parent=1 // pred_check
      _
    $region27: #{gcn_forward.1} parent=1 // pred_check_branch
      %66 = sbr.rel (0) target = $region29
    $region28: #{gcn_forward.1} parent=1 // pred_region
      %67 = dma.done [#allocation6], 1024
    $region29: #{gcn_forward.1} parent=1 // pred_fallthru
      _
    // Predicated region
    $region30: #{gcn_forward.1} parent=1 // pred_check
      _
    $region31: #{gcn_forward.1} parent=1 // pred_check_branch
      %69 = sbr.rel (0) target = $region33
    $region32: #{gcn_forward.1} parent=1 // pred_region
      %70 = dma.done [#allocation9], 16
    $region33: #{gcn_forward.1} parent=1 // pred_fallthru
      _
    %v72 = vld [vmem:[#allocation5] sm:$0xf]
    %v73 = vld [vmem:[#allocation5 + $0x4] sm:$0xf]
    %v74 = vld [vmem:[#allocation5 + $0x8] sm:$0xf]
    %v75 = vld [vmem:[#allocation5 + $0xc] sm:$0xf]
    %v76 = vld [vmem:[#allocation5 + $0x10] sm:$0xf]
    %v77 = vld [vmem:[#allocation5 + $0x14] sm:$0xf]
    %v78 = vld [vmem:[#allocation5 + $0x18] sm:$0xf]
    %v79 = vld [vmem:[#allocation5 + $0x1c] sm:$0xf]
    %v80 = vld [vmem:[#allocation5 + $0x20] sm:$0xf]
    %v81 = vld [vmem:[#allocation5 + $0x24] sm:$0xf]
    %v82 = vld [vmem:[#allocation5 + $0x28] sm:$0xf]
    %v83 = vld [vmem:[#allocation5 + $0x2c] sm:$0xf]
    %v84 = vld [vmem:[#allocation5 + $0x30] sm:$0xf]
    %v85 = vld [vmem:[#allocation5 + $0x34] sm:$0xf]
    %v86 = vld [vmem:[#allocation5 + $0x38] sm:$0xf]
    %v87 = vld [vmem:[#allocation5 + $0x3c] sm:$0xf]
    %v88 = vld [vmem:[#allocation7] sm:$0xf]
    %v89 = vld [vmem:[#allocation7 + $0x4] sm:$0xf]
    %v90 = vld [vmem:[#allocation7 + $0x8] sm:$0xf]
    %v91 = vld [vmem:[#allocation7 + $0xc] sm:$0xf]
    %v92 = vld [vmem:[#allocation7 + $0x10] sm:$0xf]
    %v93 = vld [vmem:[#allocation7 + $0x14] sm:$0xf]
    %v94 = vld [vmem:[#allocation7 + $0x18] sm:$0xf]
    %v95 = vld [vmem:[#allocation7 + $0x1c] sm:$0xf]
    %v96 = vld [vmem:[#allocation7 + $0x20] sm:$0xf]
    %v97 = vld [vmem:[#allocation7 + $0x24] sm:$0xf]
    %v98 = vld [vmem:[#allocation7 + $0x28] sm:$0xf]
    %v99 = vld [vmem:[#allocation7 + $0x2c] sm:$0xf]
    %v100 = vld [vmem:[#allocation7 + $0x30] sm:$0xf]
    %v101 = vld [vmem:[#allocation7 + $0x34] sm:$0xf]
    %v102 = vld [vmem:[#allocation7 + $0x38] sm:$0xf]
    %v103 = vld [vmem:[#allocation7 + $0x3c] sm:$0xf]
    %v120 = vunpack.c.l.b16 %v72
    %v121 = vunpack.c.l.b16 %v73
    %v122 = vunpack.c.l.b16 %v74
    %v123 = vunpack.c.l.b16 %v75
    %v124 = vunpack.c.l.b16 %v76
    %v125 = vunpack.c.l.b16 %v77
    %v126 = vunpack.c.l.b16 %v78
    %v127 = vunpack.c.l.b16 %v79
    %v128 = vunpack.c.l.b16 %v80
    %v129 = vunpack.c.l.b16 %v81
    %v130 = vunpack.c.l.b16 %v82
    %v131 = vunpack.c.l.b16 %v83
    %v132 = vunpack.c.l.b16 %v84
    %v133 = vunpack.c.l.b16 %v85
    %v134 = vunpack.c.l.b16 %v86
    %v135 = vunpack.c.l.b16 %v87
    %v136 = vpack.c.b16 %v121, %v120
    %v137 = vpack.c.b16 %v123, %v122
    %v138 = vpack.c.b16 %v125, %v124
    %v139 = vpack.c.b16 %v127, %v126
    %v140 = vpack.c.b16 %v129, %v128
    %v141 = vpack.c.b16 %v131, %v130
    %v142 = vpack.c.b16 %v133, %v132
    %v143 = vpack.c.b16 %v135, %v134
    %v168 = vunpack.c.l.b16 %v88
    %v169 = vunpack.c.l.b16 %v89
    %v170 = vunpack.c.l.b16 %v90
    %v171 = vunpack.c.l.b16 %v91
    %v172 = vunpack.c.l.b16 %v92
    %v173 = vunpack.c.l.b16 %v93
    %v174 = vunpack.c.l.b16 %v94
    %v175 = vunpack.c.l.b16 %v95
    %v176 = vunpack.c.l.b16 %v96
    %v177 = vunpack.c.l.b16 %v97
    %v178 = vunpack.c.l.b16 %v98
    %v179 = vunpack.c.l.b16 %v99
    %v180 = vunpack.c.l.b16 %v100
    %v181 = vunpack.c.l.b16 %v101
    %v182 = vunpack.c.l.b16 %v102
    %v183 = vunpack.c.l.b16 %v103
    %v184 = vpack.c.b16 %v169, %v168
    %v185 = vpack.c.b16 %v171, %v170
    %v186 = vpack.c.b16 %v173, %v172
    %v187 = vpack.c.b16 %v175, %v174
    %v188 = vpack.c.b16 %v177, %v176
    %v189 = vpack.c.b16 %v179, %v178
    %v190 = vpack.c.b16 %v181, %v180
    %v191 = vpack.c.b16 %v183, %v182
    %200 = vmatprep.subr.bf16.mxu0 0
    %201 = vmatpush1.bf16.msra.mxu0 %v184
    %202 = vmatprep.subr.bf16.mxu0 0
    %203 = vmatpush1.bf16.msra.mxu0 %v185
    %204 = vmatprep.subr.bf16.mxu0 0
    %205 = vmatpush1.bf16.msra.mxu0 %v186
    %206 = vmatprep.subr.bf16.mxu0 0
    %207 = vmatpush1.bf16.msra.mxu0 %v187
    %208 = vmatprep.subr.bf16.mxu0 0
    %209 = vmatpush1.bf16.msra.mxu0 %v188
    %210 = vmatprep.subr.bf16.mxu0 0
    %211 = vmatpush1.bf16.msra.mxu0 %v189
    %212 = vmatprep.subr.bf16.mxu0 0
    %213 = vmatpush1.bf16.msra.mxu0 %v190
    %214 = vmatprep.subr.bf16.mxu0 0
    %215 = vmatpush1.bf16.msra.mxu0 %v191
    %216 = vmatprep.subr.bf16.mxu0 0
    %217 = vmatpush1.bf16.msra.mxu0 0
    %218 = vmatprep.subr.bf16.mxu0 0
    %219 = vmatpush1.bf16.msra.mxu0 0
    %220 = vmatprep.subr.bf16.mxu0 0
    %221 = vmatpush1.bf16.msra.mxu0 0
    %222 = vmatprep.subr.bf16.mxu0 0
    %223 = vmatpush1.bf16.msra.mxu0 0
    %224 = vmatprep.subr.bf16.mxu0 0
    %225 = vmatpush1.bf16.msra.mxu0 0
    %226 = vmatprep.subr.bf16.mxu0 0
    %227 = vmatpush1.bf16.msra.mxu0 0
    %228 = vmatprep.subr.bf16.mxu0 0
    %229 = vmatpush1.bf16.msra.mxu0 0
    %230 = vmatprep.subr.bf16.mxu0 0
    %231 = vmatpush1.bf16.msra.mxu0 0
    %232 = vmatprep.mubr.bf16.mxu0 0
    %233 = vmatmul.mubr.bf16.gmra.mrb[0].mxu0 %v136
    %v234 = vpop.f32.mrb[0].mxu0
    %v235 = vadd.f32 0.0, %v234
    %v236 = vpop.f32.mrb[0].mxu0
    %v237 = vpop.f32.mrb[0].mxu0
    %v238 = vadd.f32 0.0, %v237
    %v239 = vpop.f32.mrb[0].mxu0
    %240 = vmatprep.mubr.bf16.mxu0 0
    %241 = vmatmul.mubr.bf16.gmra.mrb[0].mxu0 %v137
    %v242 = vpop.f32.mrb[0].mxu0
    %v243 = vadd.f32 0.0, %v242
    %v244 = vpop.f32.mrb[0].mxu0
    %v245 = vpop.f32.mrb[0].mxu0
    %v246 = vadd.f32 0.0, %v245
    %v247 = vpop.f32.mrb[0].mxu0
    %248 = vmatprep.mubr.bf16.mxu0 0
    %249 = vmatmul.mubr.bf16.gmra.mrb[0].mxu0 %v138
    %v250 = vpop.f32.mrb[0].mxu0
    %v251 = vadd.f32 0.0, %v250
    %v252 = vpop.f32.mrb[0].mxu0
    %v253 = vpop.f32.mrb[0].mxu0
    %v254 = vadd.f32 0.0, %v253
    %v255 = vpop.f32.mrb[0].mxu0
    %256 = vmatprep.mubr.bf16.mxu0 0
    %257 = vmatmul.mubr.bf16.gmra.mrb[0].mxu0 %v139
    %v258 = vpop.f32.mrb[0].mxu0
    %v259 = vadd.f32 0.0, %v258
    %v260 = vpop.f32.mrb[0].mxu0
    %v261 = vpop.f32.mrb[0].mxu0
    %v262 = vadd.f32 0.0, %v261
    %v263 = vpop.f32.mrb[0].mxu0
    %264 = vmatprep.mubr.bf16.mxu0 0
    %265 = vmatmul.mubr.bf16.gmra.mrb[0].mxu0 %v140
    %v266 = vpop.f32.mrb[0].mxu0
    %v267 = vadd.f32 0.0, %v266
    %v268 = vpop.f32.mrb[0].mxu0
    %v269 = vpop.f32.mrb[0].mxu0
    %v270 = vadd.f32 0.0, %v269
    %v271 = vpop.f32.mrb[0].mxu0
    %272 = vmatprep.mubr.bf16.mxu0 0
    %273 = vmatmul.mubr.bf16.gmra.mrb[0].mxu0 %v141
    %v274 = vpop.f32.mrb[0].mxu0
    %v275 = vadd.f32 0.0, %v274
    %v276 = vpop.f32.mrb[0].mxu0
    %v277 = vpop.f32.mrb[0].mxu0
    %v278 = vadd.f32 0.0, %v277
    %v279 = vpop.f32.mrb[0].mxu0
    %280 = vmatprep.mubr.bf16.mxu0 0
    %281 = vmatmul.mubr.bf16.gmra.mrb[0].mxu0 %v142
    %v282 = vpop.f32.mrb[0].mxu0
    %v283 = vadd.f32 0.0, %v282
    %v284 = vpop.f32.mrb[0].mxu0
    %v285 = vpop.f32.mrb[0].mxu0
    %v286 = vadd.f32 0.0, %v285
    %v287 = vpop.f32.mrb[0].mxu0
    %288 = vmatprep.mubr.bf16.mxu0 0
    %289 = vmatmul.mubr.bf16.gmra.mrb[0].mxu0 %v143
    %v290 = vpop.f32.mrb[0].mxu0
    %v291 = vadd.f32 0.0, %v290
    %v292 = vpop.f32.mrb[0].mxu0
    %v293 = vpop.f32.mrb[0].mxu0
    %v294 = vadd.f32 0.0, %v293
    %v295 = vpop.f32.mrb[0].mxu0
    %296 = vdwg.mxu0
    %v297 = vld [vmem:[#allocation2] sm:$0xf]
    %v298 = vld [vmem:[#allocation2 + $0x4] sm:$0xf]
    %v299 = vld [vmem:[#allocation2 + $0x8] sm:$0xf]
    %v300 = vld [vmem:[#allocation2 + $0xc] sm:$0xf]
    %v301 = vld [vmem:[#allocation2 + $0x10] sm:$0xf]
    %v302 = vld [vmem:[#allocation2 + $0x14] sm:$0xf]
    %v303 = vld [vmem:[#allocation2 + $0x18] sm:$0xf]
    %v304 = vld [vmem:[#allocation2 + $0x1c] sm:$0xf]
    %v305 = vld [vmem:[#allocation2 + $0x20] sm:$0xf]
    %v306 = vld [vmem:[#allocation2 + $0x24] sm:$0xf]
    %v307 = vld [vmem:[#allocation2 + $0x28] sm:$0xf]
    %v308 = vld [vmem:[#allocation2 + $0x2c] sm:$0xf]
    %v309 = vld [vmem:[#allocation2 + $0x30] sm:$0xf]
    %v310 = vld [vmem:[#allocation2 + $0x34] sm:$0xf]
    %v311 = vld [vmem:[#allocation2 + $0x38] sm:$0xf]
    %v312 = vld [vmem:[#allocation2 + $0x3c] sm:$0xf]
    %v313 = vpack.c.bf16 %v238, %v235
    %v314 = vpack.c.bf16 %v246, %v243
    %v315 = vpack.c.bf16 %v254, %v251
    %v316 = vpack.c.bf16 %v262, %v259
    %v317 = vpack.c.bf16 %v270, %v267
    %v318 = vpack.c.bf16 %v278, %v275
    %v319 = vpack.c.bf16 %v286, %v283
    %v320 = vpack.c.bf16 %v294, %v291
    %v321 = vld [vmem:[#allocation8] sm:$0x1]
    %v323 = vlaneseq
    %v324 = vshrl.u32 %v323, 7
    %v325 = vsub.s32 0, %v324
    %v326 = vrot.slane %v321, %v325
    %v344 = vunpack.c.l.b16 %v297
    %v345 = vunpack.c.l.b16 %v298
    %v346 = vunpack.c.l.b16 %v299
    %v347 = vunpack.c.l.b16 %v300
    %v348 = vunpack.c.l.b16 %v301
    %v349 = vunpack.c.l.b16 %v302
    %v350 = vunpack.c.l.b16 %v303
    %v351 = vunpack.c.l.b16 %v304
    %v352 = vunpack.c.l.b16 %v305
    %v353 = vunpack.c.l.b16 %v306
    %v354 = vunpack.c.l.b16 %v307
    %v355 = vunpack.c.l.b16 %v308
    %v356 = vunpack.c.l.b16 %v309
    %v357 = vunpack.c.l.b16 %v310
    %v358 = vunpack.c.l.b16 %v311
    %v359 = vunpack.c.l.b16 %v312
    %v360 = vpack.c.b16 %v345, %v344
    %v361 = vpack.c.b16 %v347, %v346
    %v362 = vpack.c.b16 %v349, %v348
    %v363 = vpack.c.b16 %v351, %v350
    %v364 = vpack.c.b16 %v353, %v352
    %v365 = vpack.c.b16 %v355, %v354
    %v366 = vpack.c.b16 %v357, %v356
    %v367 = vpack.c.b16 %v359, %v358
    %376 = vmatprep.subr.bf16.mxu0 0
    %377 = vmatpush1.bf16.msra.mxu0 %v313
    %378 = vmatprep.subr.bf16.mxu0 0
    %379 = vmatpush1.bf16.msra.mxu0 %v314
    %380 = vmatprep.subr.bf16.mxu0 0
    %381 = vmatpush1.bf16.msra.mxu0 %v315
    %382 = vmatprep.subr.bf16.mxu0 0
    %383 = vmatpush1.bf16.msra.mxu0 %v316
    %384 = vmatprep.subr.bf16.mxu0 0
    %385 = vmatpush1.bf16.msra.mxu0 %v317
    %386 = vmatprep.subr.bf16.mxu0 0
    %387 = vmatpush1.bf16.msra.mxu0 %v318
    %388 = vmatprep.subr.bf16.mxu0 0
    %389 = vmatpush1.bf16.msra.mxu0 %v319
    %390 = vmatprep.subr.bf16.mxu0 0
    %391 = vmatpush1.bf16.msra.mxu0 %v320
    %392 = vmatprep.subr.bf16.mxu0 0
    %393 = vmatpush1.bf16.msra.mxu0 0
    %394 = vmatprep.subr.bf16.mxu0 0
    %395 = vmatpush1.bf16.msra.mxu0 0
    %396 = vmatprep.subr.bf16.mxu0 0
    %397 = vmatpush1.bf16.msra.mxu0 0
    %398 = vmatprep.subr.bf16.mxu0 0
    %399 = vmatpush1.bf16.msra.mxu0 0
    %400 = vmatprep.subr.bf16.mxu0 0
    %401 = vmatpush1.bf16.msra.mxu0 0
    %402 = vmatprep.subr.bf16.mxu0 0
    %403 = vmatpush1.bf16.msra.mxu0 0
    %404 = vmatprep.subr.bf16.mxu0 0
    %405 = vmatpush1.bf16.msra.mxu0 0
    %406 = vmatprep.subr.bf16.mxu0 0
    %407 = vmatpush1.bf16.msra.mxu0 0
    %408 = vmatprep.mubr.bf16.mxu0 0
    %409 = vmatmul.mubr.bf16.gmra.mrb[0].mxu0 %v360
    %v410 = vpop.f32.mrb[0].mxu0
    %v411 = vadd.f32 %v326, %v410
    %v412 = vpop.f32.mrb[0].mxu0
    %v413 = vpop.f32.mrb[0].mxu0
    %v414 = vadd.f32 %v326, %v413
    %v415 = vpop.f32.mrb[0].mxu0
    %416 = vmatprep.mubr.bf16.mxu0 0
    %417 = vmatmul.mubr.bf16.gmra.mrb[0].mxu0 %v361
    %v418 = vpop.f32.mrb[0].mxu0
    %v419 = vadd.f32 %v326, %v418
    %v420 = vpop.f32.mrb[0].mxu0
    %v421 = vpop.f32.mrb[0].mxu0
    %v422 = vadd.f32 %v326, %v421
    %v423 = vpop.f32.mrb[0].mxu0
    %424 = vmatprep.mubr.bf16.mxu0 0
    %425 = vmatmul.mubr.bf16.gmra.mrb[0].mxu0 %v362
    %v426 = vpop.f32.mrb[0].mxu0
    %v427 = vadd.f32 %v326, %v426
    %v428 = vpop.f32.mrb[0].mxu0
    %v429 = vpop.f32.mrb[0].mxu0
    %v430 = vadd.f32 %v326, %v429
    %v431 = vpop.f32.mrb[0].mxu0
    %432 = vmatprep.mubr.bf16.mxu0 0
    %433 = vmatmul.mubr.bf16.gmra.mrb[0].mxu0 %v363
    %v434 = vpop.f32.mrb[0].mxu0
    %v435 = vadd.f32 %v326, %v434
    %v436 = vpop.f32.mrb[0].mxu0
    %v437 = vpop.f32.mrb[0].mxu0
    %v438 = vadd.f32 %v326, %v437
    %v439 = vpop.f32.mrb[0].mxu0
    %440 = vmatprep.mubr.bf16.mxu0 0
    %441 = vmatmul.mubr.bf16.gmra.mrb[0].mxu0 %v364
    %v442 = vpop.f32.mrb[0].mxu0
    %v443 = vadd.f32 %v326, %v442
    %v444 = vpop.f32.mrb[0].mxu0
    %v445 = vpop.f32.mrb[0].mxu0
    %v446 = vadd.f32 %v326, %v445
    %v447 = vpop.f32.mrb[0].mxu0
    %448 = vmatprep.mubr.bf16.mxu0 0
    %449 = vmatmul.mubr.bf16.gmra.mrb[0].mxu0 %v365
    %v450 = vpop.f32.mrb[0].mxu0
    %v451 = vadd.f32 %v326, %v450
    %v452 = vpop.f32.mrb[0].mxu0
    %v453 = vpop.f32.mrb[0].mxu0
    %v454 = vadd.f32 %v326, %v453
    %v455 = vpop.f32.mrb[0].mxu0
    %456 = vmatprep.mubr.bf16.mxu0 0
    %457 = vmatmul.mubr.bf16.gmra.mrb[0].mxu0 %v366
    %v458 = vpop.f32.mrb[0].mxu0
    %v459 = vadd.f32 %v326, %v458
    %v460 = vpop.f32.mrb[0].mxu0
    %v461 = vpop.f32.mrb[0].mxu0
    %v462 = vadd.f32 %v326, %v461
    %v463 = vpop.f32.mrb[0].mxu0
    %464 = vmatprep.mubr.bf16.mxu0 0
    %465 = vmatmul.mubr.bf16.gmra.mrb[0].mxu0 %v367
    %v466 = vpop.f32.mrb[0].mxu0
    %v467 = vadd.f32 %v326, %v466
    %v468 = vpop.f32.mrb[0].mxu0
    %v469 = vpop.f32.mrb[0].mxu0
    %v470 = vadd.f32 %v326, %v469
    %v471 = vpop.f32.mrb[0].mxu0
    %472 = vdwg.mxu0
    %473 = vst [vmem:[#allocation10] sm:$0xff] %v411
    %474 = vst [vmem:[#allocation10 + $0x8] sm:$0xff] %v414
    %475 = vst [vmem:[#allocation10 + $0x10] sm:$0xff] %v419
    %476 = vst [vmem:[#allocation10 + $0x18] sm:$0xff] %v422
    %477 = vst [vmem:[#allocation10 + $0x20] sm:$0xff] %v427
    %478 = vst [vmem:[#allocation10 + $0x28] sm:$0xff] %v430
    %479 = vst [vmem:[#allocation10 + $0x30] sm:$0xff] %v435
    %480 = vst [vmem:[#allocation10 + $0x38] sm:$0xff] %v438
    %481 = vst [vmem:[#allocation10 + $0x40] sm:$0xff] %v443
    %482 = vst [vmem:[#allocation10 + $0x48] sm:$0xff] %v446
    %483 = vst [vmem:[#allocation10 + $0x50] sm:$0xff] %v451
    %484 = vst [vmem:[#allocation10 + $0x58] sm:$0xff] %v454
    %485 = vst [vmem:[#allocation10 + $0x60] sm:$0xff] %v459
    %486 = vst [vmem:[#allocation10 + $0x68] sm:$0xff] %v462
    %487 = vst [vmem:[#allocation10 + $0x70] sm:$0xff] %v467
    %488 = vst [vmem:[#allocation10 + $0x78] sm:$0xff] %v470
    // Predicated region
    $region34: #{gcn_forward.1} parent=1 // pred_check
      _
    $region35: #{gcn_forward.1} parent=1 // pred_check_branch
      %490 = sbr.rel (0) target = $region37
    $region36: #{gcn_forward.1} parent=1 // pred_region
      %s492 = ssub.s32 2048, 2048
      %493 = vsyncadd [#allocation4], %s492
      %s494 = sshll.u32 [#allocation10], 4
      %s495 = int_to_ptr.vmem [resolvable:$true] %s494
      %500 = dma.vmem_to_hbm [thread:$0]  %s495, 2048, %s4, [#allocation4], 128, 128, 8
    $region37: #{gcn_forward.1} parent=1 // pred_fallthru
      _
    // Predicated region
    $region38: #{gcn_forward.1} parent=1 // pred_check
      _
    $region39: #{gcn_forward.1} parent=1 // pred_check_branch
      %502 = sbr.rel (0) target = $region41
    $region40: #{gcn_forward.1} parent=1 // pred_region
      %503 = dma.done [#allocation4], 2048
    $region41: #{gcn_forward.1} parent=1 // pred_fallthru
      _
    %504 = vsyncpa [#allocation3], 1
    %505 = vsyncpa [#allocation6], 1
    %506 = vsyncpa [#allocation9], 1
    %507 = vsyncpa [#allocation4], 1

</llo_original>
